<compile_context>
chip_gen: v7x
topology: tpu7x:2x2x1
jax: 0.10.0
libtpu: 0.0.40
codegen_flags: <defaults>
</compile_context>

<pallas_src>
import functools

import jax
import jax.numpy as jnp
import numpy as np
from jax.experimental import pallas as pl
from jax.experimental.pallas import tpu as pltpu


def _round_up(x, m):
    return ((x + m - 1) // m) * m


def _lsp_loss_kernel(s_ref, t_ref, c_ref, out_ref,
                     st_acc, ss_acc, cc_acc, *, acc_w):
    """One (tile_b, tile_d) block of the cosine-similarity loss.

    Grid: (batch tiles [parallel], feature tiles [arbitrary, last]).
    st/ss/cc are (tile_b, acc_w) f32 VMEM scratch, resident across the
    feature axis.
    """
    d = pl.program_id(1)

    @pl.when(d == 0)
    def _init():
        st_acc[...] = jnp.zeros_like(st_acc)
        ss_acc[...] = jnp.zeros_like(ss_acc)
        cc_acc[...] = jnp.zeros_like(cc_acc)

    tile_d = s_ref.shape[1]
    # Fused product + lane fold: accumulate per acc_w(=128)-lane chunk so the
    # live intermediates are (tile_b, acc_w), not (tile_b, tile_d).  Static
    # 128-aligned lane slices are free (vreg selects).
    for j in range(tile_d // acc_w):
        lo = j * acc_w
        s_j = s_ref[:, lo:lo + acc_w].astype(jnp.float32)
        t_j = t_ref[:, lo:lo + acc_w].astype(jnp.float32)
        c_j = c_ref[:, lo:lo + acc_w].astype(jnp.float32)
        tc_j = t_j - c_j
        st_acc[...] += s_j * tc_j      # <student, teacher - center>
        ss_acc[...] += s_j * s_j       # ||student||^2
        cc_acc[...] += tc_j * tc_j     # ||teacher - center||^2

    @pl.when(d == pl.num_programs(1) - 1)
    def _finalize():
        st = jnp.sum(st_acc[...], axis=1, keepdims=True)
        ss = jnp.sum(ss_acc[...], axis=1, keepdims=True)
        cc = jnp.sum(cc_acc[...], axis=1, keepdims=True)
        # student_temp and teacher_temp * ||teacher|| cancel in the cosine.
        # PyTorch's 1e-8 eps clamp only differs when ||T-C||/(temp*||T||)
        # < 1e-8; here a tiny positive clamp just guards against 0/0.
        denom = jnp.maximum(jnp.sqrt(ss * cc), 1e-20)
        cos = st / denom
        out_ref[...] = (0.5 * (cos + 1.0)).astype(out_ref.dtype)


@functools.partial(
    jax.jit,
    static_argnames=("student_temp", "teacher_temp_epoch", "tile_b", "tile_d"))
def lsp_loss_pallas(student, teacher, center, *, student_temp,
                    teacher_temp_epoch, tile_b=None, tile_d=None):
    """0.5*(1 + cos(student_norm, (teacher-center)/(temp*||teacher||))) per row.

    student_temp / teacher_temp_epoch are accepted for API fidelity with the
    PyTorch module but cancel mathematically (cosine is scale-invariant), so
    they are not used inside the kernel.  bf16 student/teacher are supported
    (upcast in-kernel) and recommended on v5e where HBM bandwidth binds.
    """
    del student_temp, teacher_temp_epoch  # cancel in the cosine (see kernel)

    B, D = student.shape
    assert teacher.shape == (B, D)
    center = center.reshape(1, D).astype(jnp.float32)

    s_item = jnp.dtype(student.dtype).itemsize
    t_item = jnp.dtype(teacher.dtype).itemsize
    min_sub = 16 if min(s_item, t_item) < 4 else 8   # sublane granularity

    # ---- generation-aware VMEM budget (v7x: 64 MiB, v5e/v6e: 128 MiB) ----
    try:
        vmem_cap = int(pltpu.get_tpu_info().vmem_capacity_bytes)
    except Exception:      # no hw info -> assume the smallest (v7x), safe all
        vmem_cap = 64 * 1024 * 1024
    vmem_limit = int(min(0.75 * vmem_cap, 100 * 1024 * 1024))
    stream_budget = int(0.6 * vmem_limit)   # for double-buffered streamed ops

    # ---- feature tile: full D if small, else a 128-multiple divisor <= 2048
    if tile_d is None:
        if D <= 2048 or D % 128 != 0:
            tile_d = D
        else:
            for cand in (2048, 1024, 512, 256, 128):
                if D % cand == 0:
                    tile_d = cand
                    break
    assert D % tile_d == 0, "tile_d must divide D (reduction axis)"
    acc_w = 128 if tile_d % 128 == 0 else tile_d

    # ---- batch tile from the VMEM budget ---------------------------------
    bytes_per_row = 2 * tile_d * (s_item + t_item)   # 2 pipeline buffers
    bytes_per_row += 6 * acc_w * 4                   # accumulators + transients
    if tile_b is None:
        budget_rows = max(min_sub,
                          (stream_budget - 2 * tile_d * 4) // bytes_per_row)
        tile_b = min(512, int(budget_rows))
        # Keep >= ~4 batch grid steps when the batch is big enough, so the
        # "parallel" axis shards across v7x's two TensorCores and pipelines.
        if B >= 4 * min_sub:
            tile_b = min(tile_b, _round_up(-(-B // 4), min_sub))
    if tile_b >= B:
        tile_b = B                                   # full-extent batch block
    else:
        tile_b = max(min_sub, (int(tile_b) // min_sub) * min_sub)
        if tile_b >= B:
            tile_b = B
    grid_b = -(-B // tile_b)        # ragged final batch block is clipped
    grid_d = D // tile_d
    b_pad = grid_b * tile_b         # output rows >= B hold garbage, sliced off

    kernel = functools.partial(_lsp_loss_kernel, acc_w=acc_w)

    out = pl.pallas_call(
        kernel,
        out_shape=jax.ShapeDtypeStruct((b_pad, 1), jnp.float32),
        grid_spec=pltpu.PrefetchScalarGridSpec(
            num_scalar_prefetch=0,
            grid=(grid_b, grid_d),
            in_specs=[
                pl.BlockSpec((tile_b, tile_d), lambda i, d: (i, d)),  # student
                pl.BlockSpec((tile_b, tile_d), lambda i, d: (i, d)),  # teacher
                pl.BlockSpec((1, tile_d), lambda i, d: (0, d)),       # center
            ],
            out_specs=pl.BlockSpec((tile_b, 1), lambda i, d: (i, 0)),
            scratch_shapes=[pltpu.VMEM((tile_b, acc_w), jnp.float32)] * 3,
        ),
        compiler_params=pltpu.CompilerParams(
            dimension_semantics=("parallel", "arbitrary"),
            vmem_limit_bytes=vmem_limit,
        ),
        cost_estimate=pl.CostEstimate(
            flops=int(7 * B * D),
            transcendentals=int(B),
            bytes_accessed=int(B * D * (s_item + t_item) + D * 4 + B * 4),
        ),
    )(student, teacher, center)
    return out[:B, 0]


def lsp_loss_ref(student, teacher, center, student_temp, temp):
    """Pure-JAX reference mirroring the PyTorch forward (with temps & eps)."""
    student = student.astype(jnp.float32)
    teacher = teacher.astype(jnp.float32)
    center = center.astype(jnp.float32)
    s = student / student_temp
    t_out = (teacher - center) / (temp * jnp.linalg.norm(teacher, axis=1,
                                                         keepdims=True))
    s_norm = s / jnp.linalg.norm(s, axis=1, keepdims=True)
    num = jnp.sum(s_norm * t_out, axis=1)
    denom = jnp.maximum(
        jnp.linalg.norm(s_norm, axis=1) * jnp.linalg.norm(t_out, axis=1), 1e-8)
    cos = num / denom
    return 0.5 * (cos + 1.0)


def make_teacher_temp_schedule(warmup_teacher_temp, teacher_temp,
                               warmup_teacher_temp_epochs, nepochs):
    return np.concatenate((
        np.linspace(warmup_teacher_temp, teacher_temp,
                    warmup_teacher_temp_epochs),
        np.ones(nepochs - warmup_teacher_temp_epochs) * teacher_temp,
    ))


if __name__ == "__main__":
    # Module config (deterministic, in-script; small synthetic shapes).
    out_dim = 1024
    ncrops = 2                      # unused in the forward path
    warmup_teacher_temp = 0.04
    teacher_temp = 0.07
    warmup_teacher_temp_epochs = 5
    nepochs = 10
    backbone_model_temp = 0.1
    epoch = 3

    schedule = make_teacher_temp_schedule(
        warmup_teacher_temp, teacher_temp, warmup_teacher_temp_epochs, nepochs)
    temp_e = float(schedule[epoch])

    # Buffers: center initialized to zeros as in __init__.
    center = jnp.zeros((1, out_dim), dtype=jnp.float32)

    key = jax.random.PRNGKey(0)
    k1, k2, k3, k4, k5, k6 = jax.random.split(key, 6)

    # ---- float32 path (tiny batch, full-extent batch block) ----
    B = 4
    student = jax.random.normal(k1, (B, out_dim), dtype=jnp.float32)
    teacher = jax.random.normal(k2, (B, out_dim), dtype=jnp.float32)
    out_f32 = lsp_loss_pallas(student, teacher, center,
                              student_temp=backbone_model_temp,
                              teacher_temp_epoch=temp_e)
    out_f32 = jax.block_until_ready(out_f32)
    ref_f32 = lsp_loss_ref(student, teacher, center, backbone_model_temp, temp_e)
    np.testing.assert_allclose(np.asarray(out_f32), np.asarray(ref_f32),
                               rtol=1e-5, atol=1e-5)

    # ---- bfloat16 path (halved HBM traffic; kernel upcasts per chunk) ----
    B_bf = 16
    student_bf16 = jax.random.normal(k3, (B_bf, out_dim),
                                     dtype=jnp.float32).astype(jnp.bfloat16)
    teacher_bf16 = jax.random.normal(k4, (B_bf, out_dim),
                                     dtype=jnp.float32).astype(jnp.bfloat16)
    out_bf16 = lsp_loss_pallas(student_bf16, teacher_bf16, center,
                               student_temp=backbone_model_temp,
                               teacher_temp_epoch=temp_e)
    out_bf16 = jax.block_until_ready(out_bf16)
    ref_bf16 = lsp_loss_ref(student_bf16, teacher_bf16, center,
                            backbone_model_temp, temp_e)
    np.testing.assert_allclose(np.asarray(out_bf16), np.asarray(ref_bf16),
                               rtol=1e-5, atol=1e-5)

    # ---- ragged batch + multi-step feature reduction (accumulator path) ----
    B_rg = 36                       # not tile-aligned -> clipped final block
    student_rg = jax.random.normal(k5, (B_rg, out_dim), dtype=jnp.float32)
    teacher_rg = jax.random.normal(k6, (B_rg, out_dim), dtype=jnp.float32)
    out_rg = lsp_loss_pallas(student_rg, teacher_rg, center,
                             student_temp=backbone_model_temp,
                             teacher_temp_epoch=temp_e,
                             tile_d=256)                # grid_d = 4
    out_rg = jax.block_until_ready(out_rg)
    ref_rg = lsp_loss_ref(student_rg, teacher_rg, center,
                          backbone_model_temp, temp_e)
    np.testing.assert_allclose(np.asarray(out_rg), np.asarray(ref_rg),
                               rtol=1e-5, atol=1e-5)

    print("KERNEL_OK")
</pallas_src>

<mosaic_0001>
module attributes {stable_mosaic.version = 11 : i64} {
  func.func @_lsp_loss_kernel(%arg0: i32, %arg1: i32, %arg2: memref<4x1024xf32, #tpu.memory_space<vmem>>, %arg3: memref<4x1024xf32, #tpu.memory_space<vmem>>, %arg4: memref<1x1024xf32, #tpu.memory_space<vmem>>, %arg5: memref<4x1xf32, #tpu.memory_space<vmem>>, %arg6: memref<4x128xf32, #tpu.memory_space<vmem>>, %arg7: memref<4x128xf32, #tpu.memory_space<vmem>>, %arg8: memref<4x128xf32, #tpu.memory_space<vmem>>) attributes {dimension_semantics = [#tpu.dimension_semantics<parallel>, #tpu.dimension_semantics<arbitrary>], iteration_bounds = array<i64: 1, 1>, scalar_prefetch = 0 : i64, scratch_operands = 3 : i64, tpu.core_type = #tpu.core_type<tc>, window_params = [{transform_indices = @transform_0, window_bounds = array<i64: 4, 1024>}, {transform_indices = @transform_1, window_bounds = array<i64: 4, 1024>}, {transform_indices = @transform_2, window_bounds = array<i64: 1, 1024>}, {transform_indices = @transform_3, window_bounds = array<i64: 4, 1>}]} {
    %c0_i32 = arith.constant 0 : i32
    %0 = arith.cmpi eq, %arg1, %c0_i32 : i32
    %1 = arith.extui %0 : i1 to i32
    %c0_i32_0 = arith.constant 0 : i32
    %2 = arith.cmpi ne, %1, %c0_i32_0 : i32
    scf.if %2 {
      %cst = arith.constant 0.000000e+00 : f32
      %142 = vector.broadcast %cst : f32 to vector<4x128xf32>
      %c0_139 = arith.constant 0 : index
      %c0_140 = arith.constant 0 : index
      %143 = vector.load %arg6[%c0_139, %c0_140] : memref<4x128xf32, #tpu.memory_space<vmem>>, vector<4x128xf32>
      tpu.vector_store %arg6[%c0_139, %c0_140], %142 {strides = array<i32>} : memref<4x128xf32, #tpu.memory_space<vmem>>, vector<4x128xf32>,
      %cst_141 = arith.constant 0.000000e+00 : f32
      %144 = vector.broadcast %cst_141 : f32 to vector<4x128xf32>
      %c0_142 = arith.constant 0 : index
      %c0_143 = arith.constant 0 : index
      %145 = vector.load %arg7[%c0_142, %c0_143] : memref<4x128xf32, #tpu.memory_space<vmem>>, vector<4x128xf32>
      tpu.vector_store %arg7[%c0_142, %c0_143], %144 {strides = array<i32>} : memref<4x128xf32, #tpu.memory_space<vmem>>, vector<4x128xf32>,
      %cst_144 = arith.constant 0.000000e+00 : f32
      %146 = vector.broadcast %cst_144 : f32 to vector<4x128xf32>
      %c0_145 = arith.constant 0 : index
      %c0_146 = arith.constant 0 : index
      %147 = vector.load %arg8[%c0_145, %c0_146] : memref<4x128xf32, #tpu.memory_space<vmem>>, vector<4x128xf32>
      tpu.vector_store %arg8[%c0_145, %c0_146], %146 {strides = array<i32>} : memref<4x128xf32, #tpu.memory_space<vmem>>, vector<4x128xf32>,
    } else {
    }
    %c0 = arith.constant 0 : index
    %c0_1 = arith.constant 0 : index
    %3 = vector.load %arg2[%c0, %c0_1] : memref<4x1024xf32, #tpu.memory_space<vmem>>, vector<4x128xf32>
    %c0_2 = arith.constant 0 : index
    %c0_3 = arith.constant 0 : index
    %4 = vector.load %arg3[%c0_2, %c0_3] : memref<4x1024xf32, #tpu.memory_space<vmem>>, vector<4x128xf32>
    %c0_4 = arith.constant 0 : index
    %c0_5 = arith.constant 0 : index
    %5 = vector.load %arg4[%c0_4, %c0_5] : memref<1x1024xf32, #tpu.memory_space<vmem>>, vector<1x128xf32>
    %6 = vector.broadcast %5 : vector<1x128xf32> to vector<4x128xf32>
    %7 = arith.subf %4, %6 : vector<4x128xf32>
    %c0_6 = arith.constant 0 : index
    %c0_7 = arith.constant 0 : index
    %8 = vector.load %arg6[%c0_6, %c0_7] : memref<4x128xf32, #tpu.memory_space<vmem>>, vector<4x128xf32>
    %9 = arith.mulf %3, %7 : vector<4x128xf32>
    %10 = arith.addf %8, %9 : vector<4x128xf32>
    %c0_8 = arith.constant 0 : index
    %c0_9 = arith.constant 0 : index
    %11 = vector.load %arg6[%c0_8, %c0_9] : memref<4x128xf32, #tpu.memory_space<vmem>>, vector<4x128xf32>
    tpu.vector_store %arg6[%c0_8, %c0_9], %10 {strides = array<i32>} : memref<4x128xf32, #tpu.memory_space<vmem>>, vector<4x128xf32>,
    %c0_10 = arith.constant 0 : index
    %c0_11 = arith.constant 0 : index
    %12 = vector.load %arg7[%c0_10, %c0_11] : memref<4x128xf32, #tpu.memory_space<vmem>>, vector<4x128xf32>
    %13 = arith.mulf %3, %3 : vector<4x128xf32>
    %14 = arith.addf %12, %13 : vector<4x128xf32>
    %c0_12 = arith.constant 0 : index
    %c0_13 = arith.constant 0 : index
    %15 = vector.load %arg7[%c0_12, %c0_13] : memref<4x128xf32, #tpu.memory_space<vmem>>, vector<4x128xf32>
    tpu.vector_store %arg7[%c0_12, %c0_13], %14 {strides = array<i32>} : memref<4x128xf32, #tpu.memory_space<vmem>>, vector<4x128xf32>,
    %c0_14 = arith.constant 0 : index
    %c0_15 = arith.constant 0 : index
    %16 = vector.load %arg8[%c0_14, %c0_15] : memref<4x128xf32, #tpu.memory_space<vmem>>, vector<4x128xf32>
    %17 = arith.mulf %7, %7 : vector<4x128xf32>
    %18 = arith.addf %16, %17 : vector<4x128xf32>
    %c0_16 = arith.constant 0 : index
    %c0_17 = arith.constant 0 : index
    %19 = vector.load %arg8[%c0_16, %c0_17] : memref<4x128xf32, #tpu.memory_space<vmem>>, vector<4x128xf32>
    tpu.vector_store %arg8[%c0_16, %c0_17], %18 {strides = array<i32>} : memref<4x128xf32, #tpu.memory_space<vmem>>, vector<4x128xf32>,
    %c0_18 = arith.constant 0 : index
    %c128 = arith.constant 128 : index
    %20 = vector.load %arg2[%c0_18, %c128] : memref<4x1024xf32, #tpu.memory_space<vmem>>, vector<4x128xf32>
    %c0_19 = arith.constant 0 : index
    %c128_20 = arith.constant 128 : index
    %21 = vector.load %arg3[%c0_19, %c128_20] : memref<4x1024xf32, #tpu.memory_space<vmem>>, vector<4x128xf32>
    %c0_21 = arith.constant 0 : index
    %c128_22 = arith.constant 128 : index
    %22 = vector.load %arg4[%c0_21, %c128_22] : memref<1x1024xf32, #tpu.memory_space<vmem>>, vector<1x128xf32>
    %23 = vector.broadcast %22 : vector<1x128xf32> to vector<4x128xf32>
    %24 = arith.subf %21, %23 : vector<4x128xf32>
    %c0_23 = arith.constant 0 : index
    %c0_24 = arith.constant 0 : index
    %25 = vector.load %arg6[%c0_23, %c0_24] : memref<4x128xf32, #tpu.memory_space<vmem>>, vector<4x128xf32>
    %26 = arith.mulf %20, %24 : vector<4x128xf32>
    %27 = arith.addf %25, %26 : vector<4x128xf32>
    %c0_25 = arith.constant 0 : index
    %c0_26 = arith.constant 0 : index
    %28 = vector.load %arg6[%c0_25, %c0_26] : memref<4x128xf32, #tpu.memory_space<vmem>>, vector<4x128xf32>
    tpu.vector_store %arg6[%c0_25, %c0_26], %27 {strides = array<i32>} : memref<4x128xf32, #tpu.memory_space<vmem>>, vector<4x128xf32>,
    %c0_27 = arith.constant 0 : index
    %c0_28 = arith.constant 0 : index
    %29 = vector.load %arg7[%c0_27, %c0_28] : memref<4x128xf32, #tpu.memory_space<vmem>>, vector<4x128xf32>
    %30 = arith.mulf %20, %20 : vector<4x128xf32>
    %31 = arith.addf %29, %30 : vector<4x128xf32>
    %c0_29 = arith.constant 0 : index
    %c0_30 = arith.constant 0 : index
    %32 = vector.load %arg7[%c0_29, %c0_30] : memref<4x128xf32, #tpu.memory_space<vmem>>, vector<4x128xf32>
    tpu.vector_store %arg7[%c0_29, %c0_30], %31 {strides = array<i32>} : memref<4x128xf32, #tpu.memory_space<vmem>>, vector<4x128xf32>,
    %c0_31 = arith.constant 0 : index
    %c0_32 = arith.constant 0 : index
    %33 = vector.load %arg8[%c0_31, %c0_32] : memref<4x128xf32, #tpu.memory_space<vmem>>, vector<4x128xf32>
    %34 = arith.mulf %24, %24 : vector<4x128xf32>
    %35 = arith.addf %33, %34 : vector<4x128xf32>
    %c0_33 = arith.constant 0 : index
    %c0_34 = arith.constant 0 : index
    %36 = vector.load %arg8[%c0_33, %c0_34] : memref<4x128xf32, #tpu.memory_space<vmem>>, vector<4x128xf32>
    tpu.vector_store %arg8[%c0_33, %c0_34], %35 {strides = array<i32>} : memref<4x128xf32, #tpu.memory_space<vmem>>, vector<4x128xf32>,
    %c0_35 = arith.constant 0 : index
    %c256 = arith.constant 256 : index
    %37 = vector.load %arg2[%c0_35, %c256] : memref<4x1024xf32, #tpu.memory_space<vmem>>, vector<4x128xf32>
    %c0_36 = arith.constant 0 : index
    %c256_37 = arith.constant 256 : index
    %38 = vector.load %arg3[%c0_36, %c256_37] : memref<4x1024xf32, #tpu.memory_space<vmem>>, vector<4x128xf32>
    %c0_38 = arith.constant 0 : index
    %c256_39 = arith.constant 256 : index
    %39 = vector.load %arg4[%c0_38, %c256_39] : memref<1x1024xf32, #tpu.memory_space<vmem>>, vector<1x128xf32>
    %40 = vector.broadcast %39 : vector<1x128xf32> to vector<4x128xf32>
    %41 = arith.subf %38, %40 : vector<4x128xf32>
    %c0_40 = arith.constant 0 : index
    %c0_41 = arith.constant 0 : index
    %42 = vector.load %arg6[%c0_40, %c0_41] : memref<4x128xf32, #tpu.memory_space<vmem>>, vector<4x128xf32>
    %43 = arith.mulf %37, %41 : vector<4x128xf32>
    %44 = arith.addf %42, %43 : vector<4x128xf32>
    %c0_42 = arith.constant 0 : index
    %c0_43 = arith.constant 0 : index
    %45 = vector.load %arg6[%c0_42, %c0_43] : memref<4x128xf32, #tpu.memory_space<vmem>>, vector<4x128xf32>
    tpu.vector_store %arg6[%c0_42, %c0_43], %44 {strides = array<i32>} : memref<4x128xf32, #tpu.memory_space<vmem>>, vector<4x128xf32>,
    %c0_44 = arith.constant 0 : index
    %c0_45 = arith.constant 0 : index
    %46 = vector.load %arg7[%c0_44, %c0_45] : memref<4x128xf32, #tpu.memory_space<vmem>>, vector<4x128xf32>
    %47 = arith.mulf %37, %37 : vector<4x128xf32>
    %48 = arith.addf %46, %47 : vector<4x128xf32>
    %c0_46 = arith.constant 0 : index
    %c0_47 = arith.constant 0 : index
    %49 = vector.load %arg7[%c0_46, %c0_47] : memref<4x128xf32, #tpu.memory_space<vmem>>, vector<4x128xf32>
    tpu.vector_store %arg7[%c0_46, %c0_47], %48 {strides = array<i32>} : memref<4x128xf32, #tpu.memory_space<vmem>>, vector<4x128xf32>,
    %c0_48 = arith.constant 0 : index
    %c0_49 = arith.constant 0 : index
    %50 = vector.load %arg8[%c0_48, %c0_49] : memref<4x128xf32, #tpu.memory_space<vmem>>, vector<4x128xf32>
    %51 = arith.mulf %41, %41 : vector<4x128xf32>
    %52 = arith.addf %50, %51 : vector<4x128xf32>
    %c0_50 = arith.constant 0 : index
    %c0_51 = arith.constant 0 : index
    %53 = vector.load %arg8[%c0_50, %c0_51] : memref<4x128xf32, #tpu.memory_space<vmem>>, vector<4x128xf32>
    tpu.vector_store %arg8[%c0_50, %c0_51], %52 {strides = array<i32>} : memref<4x128xf32, #tpu.memory_space<vmem>>, vector<4x128xf32>,
    %c0_52 = arith.constant 0 : index
    %c384 = arith.constant 384 : index
    %54 = vector.load %arg2[%c0_52, %c384] : memref<4x1024xf32, #tpu.memory_space<vmem>>, vector<4x128xf32>
    %c0_53 = arith.constant 0 : index
    %c384_54 = arith.constant 384 : index
    %55 = vector.load %arg3[%c0_53, %c384_54] : memref<4x1024xf32, #tpu.memory_space<vmem>>, vector<4x128xf32>
    %c0_55 = arith.constant 0 : index
    %c384_56 = arith.constant 384 : index
    %56 = vector.load %arg4[%c0_55, %c384_56] : memref<1x1024xf32, #tpu.memory_space<vmem>>, vector<1x128xf32>
    %57 = vector.broadcast %56 : vector<1x128xf32> to vector<4x128xf32>
    %58 = arith.subf %55, %57 : vector<4x128xf32>
    %c0_57 = arith.constant 0 : index
    %c0_58 = arith.constant 0 : index
    %59 = vector.load %arg6[%c0_57, %c0_58] : memref<4x128xf32, #tpu.memory_space<vmem>>, vector<4x128xf32>
    %60 = arith.mulf %54, %58 : vector<4x128xf32>
    %61 = arith.addf %59, %60 : vector<4x128xf32>
    %c0_59 = arith.constant 0 : index
    %c0_60 = arith.constant 0 : index
    %62 = vector.load %arg6[%c0_59, %c0_60] : memref<4x128xf32, #tpu.memory_space<vmem>>, vector<4x128xf32>
    tpu.vector_store %arg6[%c0_59, %c0_60], %61 {strides = array<i32>} : memref<4x128xf32, #tpu.memory_space<vmem>>, vector<4x128xf32>,
    %c0_61 = arith.constant 0 : index
    %c0_62 = arith.constant 0 : index
    %63 = vector.load %arg7[%c0_61, %c0_62] : memref<4x128xf32, #tpu.memory_space<vmem>>, vector<4x128xf32>
    %64 = arith.mulf %54, %54 : vector<4x128xf32>
    %65 = arith.addf %63, %64 : vector<4x128xf32>
    %c0_63 = arith.constant 0 : index
    %c0_64 = arith.constant 0 : index
    %66 = vector.load %arg7[%c0_63, %c0_64] : memref<4x128xf32, #tpu.memory_space<vmem>>, vector<4x128xf32>
    tpu.vector_store %arg7[%c0_63, %c0_64], %65 {strides = array<i32>} : memref<4x128xf32, #tpu.memory_space<vmem>>, vector<4x128xf32>,
    %c0_65 = arith.constant 0 : index
    %c0_66 = arith.constant 0 : index
    %67 = vector.load %arg8[%c0_65, %c0_66] : memref<4x128xf32, #tpu.memory_space<vmem>>, vector<4x128xf32>
    %68 = arith.mulf %58, %58 : vector<4x128xf32>
    %69 = arith.addf %67, %68 : vector<4x128xf32>
    %c0_67 = arith.constant 0 : index
    %c0_68 = arith.constant 0 : index
    %70 = vector.load %arg8[%c0_67, %c0_68] : memref<4x128xf32, #tpu.memory_space<vmem>>, vector<4x128xf32>
    tpu.vector_store %arg8[%c0_67, %c0_68], %69 {strides = array<i32>} : memref<4x128xf32, #tpu.memory_space<vmem>>, vector<4x128xf32>,
    %c0_69 = arith.constant 0 : index
    %c512 = arith.constant 512 : index
    %71 = vector.load %arg2[%c0_69, %c512] : memref<4x1024xf32, #tpu.memory_space<vmem>>, vector<4x128xf32>
    %c0_70 = arith.constant 0 : index
    %c512_71 = arith.constant 512 : index
    %72 = vector.load %arg3[%c0_70, %c512_71] : memref<4x1024xf32, #tpu.memory_space<vmem>>, vector<4x128xf32>
    %c0_72 = arith.constant 0 : index
    %c512_73 = arith.constant 512 : index
    %73 = vector.load %arg4[%c0_72, %c512_73] : memref<1x1024xf32, #tpu.memory_space<vmem>>, vector<1x128xf32>
    %74 = vector.broadcast %73 : vector<1x128xf32> to vector<4x128xf32>
    %75 = arith.subf %72, %74 : vector<4x128xf32>
    %c0_74 = arith.constant 0 : index
    %c0_75 = arith.constant 0 : index
    %76 = vector.load %arg6[%c0_74, %c0_75] : memref<4x128xf32, #tpu.memory_space<vmem>>, vector<4x128xf32>
    %77 = arith.mulf %71, %75 : vector<4x128xf32>
    %78 = arith.addf %76, %77 : vector<4x128xf32>
    %c0_76 = arith.constant 0 : index
    %c0_77 = arith.constant 0 : index
    %79 = vector.load %arg6[%c0_76, %c0_77] : memref<4x128xf32, #tpu.memory_space<vmem>>, vector<4x128xf32>
    tpu.vector_store %arg6[%c0_76, %c0_77], %78 {strides = array<i32>} : memref<4x128xf32, #tpu.memory_space<vmem>>, vector<4x128xf32>,
    %c0_78 = arith.constant 0 : index
    %c0_79 = arith.constant 0 : index
    %80 = vector.load %arg7[%c0_78, %c0_79] : memref<4x128xf32, #tpu.memory_space<vmem>>, vector<4x128xf32>
    %81 = arith.mulf %71, %71 : vector<4x128xf32>
    %82 = arith.addf %80, %81 : vector<4x128xf32>
    %c0_80 = arith.constant 0 : index
    %c0_81 = arith.constant 0 : index
    %83 = vector.load %arg7[%c0_80, %c0_81] : memref<4x128xf32, #tpu.memory_space<vmem>>, vector<4x128xf32>
    tpu.vector_store %arg7[%c0_80, %c0_81], %82 {strides = array<i32>} : memref<4x128xf32, #tpu.memory_space<vmem>>, vector<4x128xf32>,
    %c0_82 = arith.constant 0 : index
    %c0_83 = arith.constant 0 : index
    %84 = vector.load %arg8[%c0_82, %c0_83] : memref<4x128xf32, #tpu.memory_space<vmem>>, vector<4x128xf32>
    %85 = arith.mulf %75, %75 : vector<4x128xf32>
    %86 = arith.addf %84, %85 : vector<4x128xf32>
    %c0_84 = arith.constant 0 : index
    %c0_85 = arith.constant 0 : index
    %87 = vector.load %arg8[%c0_84, %c0_85] : memref<4x128xf32, #tpu.memory_space<vmem>>, vector<4x128xf32>
    tpu.vector_store %arg8[%c0_84, %c0_85], %86 {strides = array<i32>} : memref<4x128xf32, #tpu.memory_space<vmem>>, vector<4x128xf32>,
    %c0_86 = arith.constant 0 : index
    %c640 = arith.constant 640 : index
    %88 = vector.load %arg2[%c0_86, %c640] : memref<4x1024xf32, #tpu.memory_space<vmem>>, vector<4x128xf32>
    %c0_87 = arith.constant 0 : index
    %c640_88 = arith.constant 640 : index
    %89 = vector.load %arg3[%c0_87, %c640_88] : memref<4x1024xf32, #tpu.memory_space<vmem>>, vector<4x128xf32>
    %c0_89 = arith.constant 0 : index
    %c640_90 = arith.constant 640 : index
    %90 = vector.load %arg4[%c0_89, %c640_90] : memref<1x1024xf32, #tpu.memory_space<vmem>>, vector<1x128xf32>
    %91 = vector.broadcast %90 : vector<1x128xf32> to vector<4x128xf32>
    %92 = arith.subf %89, %91 : vector<4x128xf32>
    %c0_91 = arith.constant 0 : index
    %c0_92 = arith.constant 0 : index
    %93 = vector.load %arg6[%c0_91, %c0_92] : memref<4x128xf32, #tpu.memory_space<vmem>>, vector<4x128xf32>
    %94 = arith.mulf %88, %92 : vector<4x128xf32>
    %95 = arith.addf %93, %94 : vector<4x128xf32>
    %c0_93 = arith.constant 0 : index
    %c0_94 = arith.constant 0 : index
    %96 = vector.load %arg6[%c0_93, %c0_94] : memref<4x128xf32, #tpu.memory_space<vmem>>, vector<4x128xf32>
    tpu.vector_store %arg6[%c0_93, %c0_94], %95 {strides = array<i32>} : memref<4x128xf32, #tpu.memory_space<vmem>>, vector<4x128xf32>,
    %c0_95 = arith.constant 0 : index
    %c0_96 = arith.constant 0 : index
    %97 = vector.load %arg7[%c0_95, %c0_96] : memref<4x128xf32, #tpu.memory_space<vmem>>, vector<4x128xf32>
    %98 = arith.mulf %88, %88 : vector<4x128xf32>
    %99 = arith.addf %97, %98 : vector<4x128xf32>
    %c0_97 = arith.constant 0 : index
    %c0_98 = arith.constant 0 : index
    %100 = vector.load %arg7[%c0_97, %c0_98] : memref<4x128xf32, #tpu.memory_space<vmem>>, vector<4x128xf32>
    tpu.vector_store %arg7[%c0_97, %c0_98], %99 {strides = array<i32>} : memref<4x128xf32, #tpu.memory_space<vmem>>, vector<4x128xf32>,
    %c0_99 = arith.constant 0 : index
    %c0_100 = arith.constant 0 : index
    %101 = vector.load %arg8[%c0_99, %c0_100] : memref<4x128xf32, #tpu.memory_space<vmem>>, vector<4x128xf32>
    %102 = arith.mulf %92, %92 : vector<4x128xf32>
    %103 = arith.addf %101, %102 : vector<4x128xf32>
    %c0_101 = arith.constant 0 : index
    %c0_102 = arith.constant 0 : index
    %104 = vector.load %arg8[%c0_101, %c0_102] : memref<4x128xf32, #tpu.memory_space<vmem>>, vector<4x128xf32>
    tpu.vector_store %arg8[%c0_101, %c0_102], %103 {strides = array<i32>} : memref<4x128xf32, #tpu.memory_space<vmem>>, vector<4x128xf32>,
    %c0_103 = arith.constant 0 : index
    %c768 = arith.constant 768 : index
    %105 = vector.load %arg2[%c0_103, %c768] : memref<4x1024xf32, #tpu.memory_space<vmem>>, vector<4x128xf32>
    %c0_104 = arith.constant 0 : index
    %c768_105 = arith.constant 768 : index
    %106 = vector.load %arg3[%c0_104, %c768_105] : memref<4x1024xf32, #tpu.memory_space<vmem>>, vector<4x128xf32>
    %c0_106 = arith.constant 0 : index
    %c768_107 = arith.constant 768 : index
    %107 = vector.load %arg4[%c0_106, %c768_107] : memref<1x1024xf32, #tpu.memory_space<vmem>>, vector<1x128xf32>
    %108 = vector.broadcast %107 : vector<1x128xf32> to vector<4x128xf32>
    %109 = arith.subf %106, %108 : vector<4x128xf32>
    %c0_108 = arith.constant 0 : index
    %c0_109 = arith.constant 0 : index
    %110 = vector.load %arg6[%c0_108, %c0_109] : memref<4x128xf32, #tpu.memory_space<vmem>>, vector<4x128xf32>
    %111 = arith.mulf %105, %109 : vector<4x128xf32>
    %112 = arith.addf %110, %111 : vector<4x128xf32>
    %c0_110 = arith.constant 0 : index
    %c0_111 = arith.constant 0 : index
    %113 = vector.load %arg6[%c0_110, %c0_111] : memref<4x128xf32, #tpu.memory_space<vmem>>, vector<4x128xf32>
    tpu.vector_store %arg6[%c0_110, %c0_111], %112 {strides = array<i32>} : memref<4x128xf32, #tpu.memory_space<vmem>>, vector<4x128xf32>,
    %c0_112 = arith.constant 0 : index
    %c0_113 = arith.constant 0 : index
    %114 = vector.load %arg7[%c0_112, %c0_113] : memref<4x128xf32, #tpu.memory_space<vmem>>, vector<4x128xf32>
    %115 = arith.mulf %105, %105 : vector<4x128xf32>
    %116 = arith.addf %114, %115 : vector<4x128xf32>
    %c0_114 = arith.constant 0 : index
    %c0_115 = arith.constant 0 : index
    %117 = vector.load %arg7[%c0_114, %c0_115] : memref<4x128xf32, #tpu.memory_space<vmem>>, vector<4x128xf32>
    tpu.vector_store %arg7[%c0_114, %c0_115], %116 {strides = array<i32>} : memref<4x128xf32, #tpu.memory_space<vmem>>, vector<4x128xf32>,
    %c0_116 = arith.constant 0 : index
    %c0_117 = arith.constant 0 : index
    %118 = vector.load %arg8[%c0_116, %c0_117] : memref<4x128xf32, #tpu.memory_space<vmem>>, vector<4x128xf32>
    %119 = arith.mulf %109, %109 : vector<4x128xf32>
    %120 = arith.addf %118, %119 : vector<4x128xf32>
    %c0_118 = arith.constant 0 : index
    %c0_119 = arith.constant 0 : index
    %121 = vector.load %arg8[%c0_118, %c0_119] : memref<4x128xf32, #tpu.memory_space<vmem>>, vector<4x128xf32>
    tpu.vector_store %arg8[%c0_118, %c0_119], %120 {strides = array<i32>} : memref<4x128xf32, #tpu.memory_space<vmem>>, vector<4x128xf32>,
    %c0_120 = arith.constant 0 : index
    %c896 = arith.constant 896 : index
    %122 = vector.load %arg2[%c0_120, %c896] : memref<4x1024xf32, #tpu.memory_space<vmem>>, vector<4x128xf32>
    %c0_121 = arith.constant 0 : index
    %c896_122 = arith.constant 896 : index
    %123 = vector.load %arg3[%c0_121, %c896_122] : memref<4x1024xf32, #tpu.memory_space<vmem>>, vector<4x128xf32>
    %c0_123 = arith.constant 0 : index
    %c896_124 = arith.constant 896 : index
    %124 = vector.load %arg4[%c0_123, %c896_124] : memref<1x1024xf32, #tpu.memory_space<vmem>>, vector<1x128xf32>
    %125 = vector.broadcast %124 : vector<1x128xf32> to vector<4x128xf32>
    %126 = arith.subf %123, %125 : vector<4x128xf32>
    %c0_125 = arith.constant 0 : index
    %c0_126 = arith.constant 0 : index
    %127 = vector.load %arg6[%c0_125, %c0_126] : memref<4x128xf32, #tpu.memory_space<vmem>>, vector<4x128xf32>
    %128 = arith.mulf %122, %126 : vector<4x128xf32>
    %129 = arith.addf %127, %128 : vector<4x128xf32>
    %c0_127 = arith.constant 0 : index
    %c0_128 = arith.constant 0 : index
    %130 = vector.load %arg6[%c0_127, %c0_128] : memref<4x128xf32, #tpu.memory_space<vmem>>, vector<4x128xf32>
    tpu.vector_store %arg6[%c0_127, %c0_128], %129 {strides = array<i32>} : memref<4x128xf32, #tpu.memory_space<vmem>>, vector<4x128xf32>,
    %c0_129 = arith.constant 0 : index
    %c0_130 = arith.constant 0 : index
    %131 = vector.load %arg7[%c0_129, %c0_130] : memref<4x128xf32, #tpu.memory_space<vmem>>, vector<4x128xf32>
    %132 = arith.mulf %122, %122 : vector<4x128xf32>
    %133 = arith.addf %131, %132 : vector<4x128xf32>
    %c0_131 = arith.constant 0 : index
    %c0_132 = arith.constant 0 : index
    %134 = vector.load %arg7[%c0_131, %c0_132] : memref<4x128xf32, #tpu.memory_space<vmem>>, vector<4x128xf32>
    tpu.vector_store %arg7[%c0_131, %c0_132], %133 {strides = array<i32>} : memref<4x128xf32, #tpu.memory_space<vmem>>, vector<4x128xf32>,
    %c0_133 = arith.constant 0 : index
    %c0_134 = arith.constant 0 : index
    %135 = vector.load %arg8[%c0_133, %c0_134] : memref<4x128xf32, #tpu.memory_space<vmem>>, vector<4x128xf32>
    %136 = arith.mulf %126, %126 : vector<4x128xf32>
    %137 = arith.addf %135, %136 : vector<4x128xf32>
    %c0_135 = arith.constant 0 : index
    %c0_136 = arith.constant 0 : index
    %138 = vector.load %arg8[%c0_135, %c0_136] : memref<4x128xf32, #tpu.memory_space<vmem>>, vector<4x128xf32>
    tpu.vector_store %arg8[%c0_135, %c0_136], %137 {strides = array<i32>} : memref<4x128xf32, #tpu.memory_space<vmem>>, vector<4x128xf32>,
    %c0_i32_137 = arith.constant 0 : i32
    %139 = arith.cmpi eq, %arg1, %c0_i32_137 : i32
    %140 = arith.extui %139 : i1 to i32
    %c0_i32_138 = arith.constant 0 : i32
    %141 = arith.cmpi ne, %140, %c0_i32_138 : i32
    scf.if %141 {
      %c0_139 = arith.constant 0 : index
      %c0_140 = arith.constant 0 : index
      %142 = vector.load %arg6[%c0_139, %c0_140] : memref<4x128xf32, #tpu.memory_space<vmem>>, vector<4x128xf32>
      %cst = arith.constant dense<0.000000e+00> : vector<4xf32>
      %143 = vector.multi_reduction <add>, %142, %cst [1] : vector<4x128xf32> to vector<4xf32>
      %144 = vector.shape_cast %143 : vector<4xf32> to vector<4x1xf32>
      %c0_141 = arith.constant 0 : index
      %c0_142 = arith.constant 0 : index
      %145 = vector.load %arg7[%c0_141, %c0_142] : memref<4x128xf32, #tpu.memory_space<vmem>>, vector<4x128xf32>
      %cst_143 = arith.constant dense<0.000000e+00> : vector<4xf32>
      %146 = vector.multi_reduction <add>, %145, %cst_143 [1] : vector<4x128xf32> to vector<4xf32>
      %147 = vector.shape_cast %146 : vector<4xf32> to vector<4x1xf32>
      %c0_144 = arith.constant 0 : index
      %c0_145 = arith.constant 0 : index
      %148 = vector.load %arg8[%c0_144, %c0_145] : memref<4x128xf32, #tpu.memory_space<vmem>>, vector<4x128xf32>
      %cst_146 = arith.constant dense<0.000000e+00> : vector<4xf32>
      %149 = vector.multi_reduction <add>, %148, %cst_146 [1] : vector<4x128xf32> to vector<4xf32>
      %150 = vector.shape_cast %149 : vector<4xf32> to vector<4x1xf32>
      %151 = arith.mulf %147, %150 : vector<4x1xf32>
      %152 = math.sqrt %151 : vector<4x1xf32>
      %cst_147 = arith.constant 9.99999968E-21 : f32
      %153 = vector.broadcast %cst_147 : f32 to vector<4x1xf32>
      %154 = arith.maximumf %152, %153 : vector<4x1xf32>
      %155 = arith.divf %144, %154 : vector<4x1xf32>
      %cst_148 = arith.constant 1.000000e+00 : f32
      %156 = vector.broadcast %cst_148 : f32 to vector<4x1xf32>
      %157 = arith.addf %155, %156 : vector<4x1xf32>
      %cst_149 = arith.constant 5.000000e-01 : f32
      %158 = vector.broadcast %cst_149 : f32 to vector<4x1xf32>
      %159 = arith.mulf %158, %157 : vector<4x1xf32>
      %c0_150 = arith.constant 0 : index
      %c0_151 = arith.constant 0 : index
      %160 = vector.load %arg5[%c0_150, %c0_151] : memref<4x1xf32, #tpu.memory_space<vmem>>, vector<4x1xf32>
      tpu.vector_store %arg5[%c0_150, %c0_151], %159 {strides = array<i32>} : memref<4x1xf32, #tpu.memory_space<vmem>>, vector<4x1xf32>,
    } else {
    }
    return
  }
  func.func @transform_0(%arg0: i32, %arg1: i32) -> (i32, i32) {
    %c0_i32 = arith.constant 0 : i32
    return %arg0, %arg1 : i32, i32
  }
  func.func @transform_1(%arg0: i32, %arg1: i32) -> (i32, i32) {
    %c0_i32 = arith.constant 0 : i32
    return %arg0, %arg1 : i32, i32
  }
  func.func @transform_2(%arg0: i32, %arg1: i32) -> (i32, i32) {
    %c0_i32 = arith.constant 0 : i32
    %c0_i32_0 = arith.constant 0 : i32
    return %c0_i32, %arg1 : i32, i32
  }
  func.func @transform_3(%arg0: i32, %arg1: i32) -> (i32, i32) {
    %c0_i32 = arith.constant 0 : i32
    %c0_i32_0 = arith.constant 0 : i32
    return %arg0, %c0_i32 : i32, i32
  }
}

</mosaic_0001>

<llo_original>
// kernel: lsp_loss_pallas.1
$region0: #{lsp_loss_pallas.1}
  #allocation0 [shape = 'u32[]', space=smem, size = 0x4, offset = 0x4, fixed_abs, tag = 'smem constant byte address 0x4 - core index']
  #allocation1 [shape = 'u32[144,128]{1,0:T(1,128)}', space=vmem, size = 0x12000, scoped, tag = 'internal scratch']
  #allocation2 [shape = 'f32[4,128]{1,0:T(4,128)}', space=vmem, size = 0x800, scoped, tag = 'scratch operand']
  #allocation3 [shape = 'f32[4,128]{1,0:T(4,128)}', space=vmem, size = 0x800, scoped, tag = 'scratch operand']
  #allocation4 [shape = 'f32[4,128]{1,0:T(4,128)}', space=vmem, size = 0x800, scoped, tag = 'scratch operand']
  %s0 = inlined_call_operand.hbm [shape: f32[4,1024], index: 0, kind: input, shape index: {}]
  %s1 = inlined_call_operand.hbm [shape: f32[4,1024], index: 1, kind: input, shape index: {}]
  %s2 = inlined_call_operand.hbm [shape: f32[1,1024], index: 2, kind: input, shape index: {}]
  %s3 = inlined_call_operand.vmem [shape: f32[4,1], index: 3, kind: output, shape index: {}]
  %s4 = sld [smem:[#allocation0]]
  $region42: #{lsp_loss_pallas.1} parent=0
    _
  %s6 = ssub.s32 1, %s4
  %s7 = scalar_select 0, %s6, %s4
  $region1: #{lsp_loss_pallas.1} parent=0
    #allocation5 [shape = 'u8[16384]{0}', space=vmem, size = 0x4000, scoped, tag = 'input window, operand 0, single buffered']
    #allocation6 [shape = 's32[1]{0}', space=sflag, size = 0x4, scoped, tag = 'scoped memory for lsp_loss_pallas.1']
    #allocation7 [shape = 'u8[16384]{0}', space=vmem, size = 0x4000, scoped, tag = 'input window, operand 1, single buffered']
    #allocation8 [shape = 's32[1]{0}', space=sflag, size = 0x4, scoped, tag = 'scoped memory for lsp_loss_pallas.1']
    #allocation9 [shape = 'u8[4096]{0}', space=vmem, size = 0x1000, scoped, tag = 'input window, operand 2, single buffered']
    %8 = vsyncpa [#allocation6], 0
    %9 = vsyncpa [#allocation8], 0
    // Predicated region
    $region2: #{lsp_loss_pallas.1} parent=1 // pred_check
      _
    $region3: #{lsp_loss_pallas.1} parent=1 // pred_check_branch
      %11 = sbr.rel (0) target = $region5
    $region4: #{lsp_loss_pallas.1} parent=1 // pred_region
      %s13 = ssub.s32 512, 512
      %14 = vsyncadd [#allocation6], %s13
      %s16 = sshll.u32 [#allocation5], 4
      %s17 = int_to_ptr.vmem [resolvable:$true] %s16
      %19 = dma.hbm_to_vmem [thread:$0]  %s0, 512, %s17, [#allocation6]
    $region5: #{lsp_loss_pallas.1} parent=1 // pred_fallthru
      _
    // Predicated region
    $region6: #{lsp_loss_pallas.1} parent=1 // pred_check
      _
    $region7: #{lsp_loss_pallas.1} parent=1 // pred_check_branch
      %21 = sbr.rel (0) target = $region9
    $region8: #{lsp_loss_pallas.1} parent=1 // pred_region
      %s23 = ssub.s32 512, 512
      %24 = vsyncadd [#allocation8], %s23
      %s26 = sshll.u32 [#allocation7], 4
      %s27 = int_to_ptr.vmem [resolvable:$true] %s26
      %29 = dma.hbm_to_vmem [thread:$0]  %s1, 512, %s27, [#allocation8]
    $region9: #{lsp_loss_pallas.1} parent=1 // pred_fallthru
      _
    // Predicated region
    $region10: #{lsp_loss_pallas.1} parent=1 // pred_check
      _
    $region11: #{lsp_loss_pallas.1} parent=1 // pred_check_branch
      %31 = sbr.rel (0) target = $region13
    $region12: #{lsp_loss_pallas.1} parent=1 // pred_region
      %s33 = ssub.s32 128, 128
      %34 = vsyncadd [#allocation8], %s33
      %s36 = sshll.u32 [#allocation9], 4
      %s37 = int_to_ptr.vmem [resolvable:$true] %s36
      %39 = dma.hbm_to_vmem [thread:$0]  %s2, 128, %s37, [#allocation8]
    $region13: #{lsp_loss_pallas.1} parent=1 // pred_fallthru
      _
    // Predicated region
    $region14: #{lsp_loss_pallas.1} parent=1 // pred_check
      _
    $region15: #{lsp_loss_pallas.1} parent=1 // pred_check_branch
      %41 = sbr.rel (0) target = $region17
    $region16: #{lsp_loss_pallas.1} parent=1 // pred_region
      %42 = dma.done [#allocation6], 512
    $region17: #{lsp_loss_pallas.1} parent=1 // pred_fallthru
      _
    // Predicated region
    $region18: #{lsp_loss_pallas.1} parent=1 // pred_check
      _
    $region19: #{lsp_loss_pallas.1} parent=1 // pred_check_branch
      %44 = sbr.rel (0) target = $region21
    $region20: #{lsp_loss_pallas.1} parent=1 // pred_region
      %45 = dma.done [#allocation8], 512
    $region21: #{lsp_loss_pallas.1} parent=1 // pred_fallthru
      _
    // Predicated region
    $region22: #{lsp_loss_pallas.1} parent=1 // pred_check
      _
    $region23: #{lsp_loss_pallas.1} parent=1 // pred_check_branch
      %47 = sbr.rel (0) target = $region25
    $region24: #{lsp_loss_pallas.1} parent=1 // pred_region
      %48 = dma.done [#allocation8], 128
    $region25: #{lsp_loss_pallas.1} parent=1 // pred_fallthru
      _
    %p49 = scmp.eq.s32.totalorder 0, 0
    // Predicated region
    $region26: #{lsp_loss_pallas.1} parent=1 // pred_check
      %p50 = pneg %p49
    $region27: #{lsp_loss_pallas.1} parent=1 // pred_check_branch
      %52 = sbr.rel (%p50) target = $region29
    $region28: #{lsp_loss_pallas.1} parent=1 // pred_region
      %53 = vst [vmem:[#allocation2] sm:$0xf] 0.0
      %54 = vst [vmem:[#allocation3] sm:$0xf] 0.0
      %55 = vst [vmem:[#allocation4] sm:$0xf] 0.0
    $region29: #{lsp_loss_pallas.1} parent=1 // pred_fallthru
      _
    %v56 = vld [vmem:[#allocation5] sm:$0xf]
    %v57 = vld [vmem:[#allocation7] sm:$0xf]
    %v58 = vld [vmem:[#allocation9] sm:$0x1]
    %v60 = vlaneseq
    %v61 = vshrl.u32 %v60, 7
    %v62 = vsub.s32 0, %v61
    %v63 = vrot.slane %v58, %v62
    %v65 = vsub.f32 %v57, %v63
    %v66 = vld [vmem:[#allocation2] sm:$0xf]
    %v67 = vmul.f32 %v56, %v65
    %v68 = vadd.f32 %v66, %v67
    %69 = vst [vmem:[#allocation2] sm:$0xf] %v68
    %v70 = vld [vmem:[#allocation3] sm:$0xf]
    %v71 = vmul.f32 %v56, %v56
    %v72 = vadd.f32 %v70, %v71
    %73 = vst [vmem:[#allocation3] sm:$0xf] %v72
    %v74 = vld [vmem:[#allocation4] sm:$0xf]
    %v75 = vmul.f32 %v65, %v65
    %v76 = vadd.f32 %v74, %v75
    %77 = vst [vmem:[#allocation4] sm:$0xf] %v76
    %v78 = vld [vmem:[#allocation5 + $0x4] sm:$0xf]
    %v79 = vld [vmem:[#allocation7 + $0x4] sm:$0xf]
    %v80 = vld [vmem:[#allocation9 + $0x1] sm:$0x1]
    %v82 = vlaneseq
    %v83 = vshrl.u32 %v82, 7
    %v84 = vsub.s32 0, %v83
    %v85 = vrot.slane %v80, %v84
    %v87 = vsub.f32 %v79, %v85
    %v88 = vld [vmem:[#allocation2] sm:$0xf]
    %v89 = vmul.f32 %v78, %v87
    %v90 = vadd.f32 %v88, %v89
    %91 = vst [vmem:[#allocation2] sm:$0xf] %v90
    %v92 = vld [vmem:[#allocation3] sm:$0xf]
    %v93 = vmul.f32 %v78, %v78
    %v94 = vadd.f32 %v92, %v93
    %95 = vst [vmem:[#allocation3] sm:$0xf] %v94
    %v96 = vld [vmem:[#allocation4] sm:$0xf]
    %v97 = vmul.f32 %v87, %v87
    %v98 = vadd.f32 %v96, %v97
    %99 = vst [vmem:[#allocation4] sm:$0xf] %v98
    %v100 = vld [vmem:[#allocation5 + $0x8] sm:$0xf]
    %v101 = vld [vmem:[#allocation7 + $0x8] sm:$0xf]
    %v102 = vld [vmem:[#allocation9 + $0x2] sm:$0x1]
    %v104 = vlaneseq
    %v105 = vshrl.u32 %v104, 7
    %v106 = vsub.s32 0, %v105
    %v107 = vrot.slane %v102, %v106
    %v109 = vsub.f32 %v101, %v107
    %v110 = vld [vmem:[#allocation2] sm:$0xf]
    %v111 = vmul.f32 %v100, %v109
    %v112 = vadd.f32 %v110, %v111
    %113 = vst [vmem:[#allocation2] sm:$0xf] %v112
    %v114 = vld [vmem:[#allocation3] sm:$0xf]
    %v115 = vmul.f32 %v100, %v100
    %v116 = vadd.f32 %v114, %v115
    %117 = vst [vmem:[#allocation3] sm:$0xf] %v116
    %v118 = vld [vmem:[#allocation4] sm:$0xf]
    %v119 = vmul.f32 %v109, %v109
    %v120 = vadd.f32 %v118, %v119
    %121 = vst [vmem:[#allocation4] sm:$0xf] %v120
    %v122 = vld [vmem:[#allocation5 + $0xc] sm:$0xf]
    %v123 = vld [vmem:[#allocation7 + $0xc] sm:$0xf]
    %v124 = vld [vmem:[#allocation9 + $0x3] sm:$0x1]
    %v126 = vlaneseq
    %v127 = vshrl.u32 %v126, 7
    %v128 = vsub.s32 0, %v127
    %v129 = vrot.slane %v124, %v128
    %v131 = vsub.f32 %v123, %v129
    %v132 = vld [vmem:[#allocation2] sm:$0xf]
    %v133 = vmul.f32 %v122, %v131
    %v134 = vadd.f32 %v132, %v133
    %135 = vst [vmem:[#allocation2] sm:$0xf] %v134
    %v136 = vld [vmem:[#allocation3] sm:$0xf]
    %v137 = vmul.f32 %v122, %v122
    %v138 = vadd.f32 %v136, %v137
    %139 = vst [vmem:[#allocation3] sm:$0xf] %v138
    %v140 = vld [vmem:[#allocation4] sm:$0xf]
    %v141 = vmul.f32 %v131, %v131
    %v142 = vadd.f32 %v140, %v141
    %143 = vst [vmem:[#allocation4] sm:$0xf] %v142
    %v144 = vld [vmem:[#allocation5 + $0x10] sm:$0xf]
    %v145 = vld [vmem:[#allocation7 + $0x10] sm:$0xf]
    %v146 = vld [vmem:[#allocation9 + $0x4] sm:$0x1]
    %v148 = vlaneseq
    %v149 = vshrl.u32 %v148, 7
    %v150 = vsub.s32 0, %v149
    %v151 = vrot.slane %v146, %v150
    %v153 = vsub.f32 %v145, %v151
    %v154 = vld [vmem:[#allocation2] sm:$0xf]
    %v155 = vmul.f32 %v144, %v153
    %v156 = vadd.f32 %v154, %v155
    %157 = vst [vmem:[#allocation2] sm:$0xf] %v156
    %v158 = vld [vmem:[#allocation3] sm:$0xf]
    %v159 = vmul.f32 %v144, %v144
    %v160 = vadd.f32 %v158, %v159
    %161 = vst [vmem:[#allocation3] sm:$0xf] %v160
    %v162 = vld [vmem:[#allocation4] sm:$0xf]
    %v163 = vmul.f32 %v153, %v153
    %v164 = vadd.f32 %v162, %v163
    %165 = vst [vmem:[#allocation4] sm:$0xf] %v164
    %v166 = vld [vmem:[#allocation5 + $0x14] sm:$0xf]
    %v167 = vld [vmem:[#allocation7 + $0x14] sm:$0xf]
    %v168 = vld [vmem:[#allocation9 + $0x5] sm:$0x1]
    %v170 = vlaneseq
    %v171 = vshrl.u32 %v170, 7
    %v172 = vsub.s32 0, %v171
    %v173 = vrot.slane %v168, %v172
    %v175 = vsub.f32 %v167, %v173
    %v176 = vld [vmem:[#allocation2] sm:$0xf]
    %v177 = vmul.f32 %v166, %v175
    %v178 = vadd.f32 %v176, %v177
    %179 = vst [vmem:[#allocation2] sm:$0xf] %v178
    %v180 = vld [vmem:[#allocation3] sm:$0xf]
    %v181 = vmul.f32 %v166, %v166
    %v182 = vadd.f32 %v180, %v181
    %183 = vst [vmem:[#allocation3] sm:$0xf] %v182
    %v184 = vld [vmem:[#allocation4] sm:$0xf]
    %v185 = vmul.f32 %v175, %v175
    %v186 = vadd.f32 %v184, %v185
    %187 = vst [vmem:[#allocation4] sm:$0xf] %v186
    %v188 = vld [vmem:[#allocation5 + $0x18] sm:$0xf]
    %v189 = vld [vmem:[#allocation7 + $0x18] sm:$0xf]
    %v190 = vld [vmem:[#allocation9 + $0x6] sm:$0x1]
    %v192 = vlaneseq
    %v193 = vshrl.u32 %v192, 7
    %v194 = vsub.s32 0, %v193
    %v195 = vrot.slane %v190, %v194
    %v197 = vsub.f32 %v189, %v195
    %v198 = vld [vmem:[#allocation2] sm:$0xf]
    %v199 = vmul.f32 %v188, %v197
    %v200 = vadd.f32 %v198, %v199
    %201 = vst [vmem:[#allocation2] sm:$0xf] %v200
    %v202 = vld [vmem:[#allocation3] sm:$0xf]
    %v203 = vmul.f32 %v188, %v188
    %v204 = vadd.f32 %v202, %v203
    %205 = vst [vmem:[#allocation3] sm:$0xf] %v204
    %v206 = vld [vmem:[#allocation4] sm:$0xf]
    %v207 = vmul.f32 %v197, %v197
    %v208 = vadd.f32 %v206, %v207
    %209 = vst [vmem:[#allocation4] sm:$0xf] %v208
    %v210 = vld [vmem:[#allocation5 + $0x1c] sm:$0xf]
    %v211 = vld [vmem:[#allocation7 + $0x1c] sm:$0xf]
    %v212 = vld [vmem:[#allocation9 + $0x7] sm:$0x1]
    %v214 = vlaneseq
    %v215 = vshrl.u32 %v214, 7
    %v216 = vsub.s32 0, %v215
    %v217 = vrot.slane %v212, %v216
    %v219 = vsub.f32 %v211, %v217
    %v220 = vld [vmem:[#allocation2] sm:$0xf]
    %v221 = vmul.f32 %v210, %v219
    %v222 = vadd.f32 %v220, %v221
    %223 = vst [vmem:[#allocation2] sm:$0xf] %v222
    %v224 = vld [vmem:[#allocation3] sm:$0xf]
    %v225 = vmul.f32 %v210, %v210
    %v226 = vadd.f32 %v224, %v225
    %227 = vst [vmem:[#allocation3] sm:$0xf] %v226
    %v228 = vld [vmem:[#allocation4] sm:$0xf]
    %v229 = vmul.f32 %v219, %v219
    %v230 = vadd.f32 %v228, %v229
    %231 = vst [vmem:[#allocation4] sm:$0xf] %v230
    // Predicated region
    $region30: #{lsp_loss_pallas.1} parent=1 // pred_check
      %p232 = pneg %p49
    $region31: #{lsp_loss_pallas.1} parent=1 // pred_check_branch
      %234 = sbr.rel (%p232) target = $region33
    $region32: #{lsp_loss_pallas.1} parent=1 // pred_region
      %v235 = vld [vmem:[#allocation2] sm:$0xf]
      %vm236 = vcmask 1043456
      %v237 = vsel %vm236, %v235, 0.0
      %238 = vadd.xlane.f32.xlu0 %v237
      %v239 = vpop.xlane.xlu0 %238
      %v240 = vld [vmem:[#allocation3] sm:$0xf]
      %v241 = vsel %vm236, %v240, 0.0
      %242 = vadd.xlane.f32.xlu0 %v241
      %v243 = vpop.xlane.xlu0 %242
      %v244 = vld [vmem:[#allocation4] sm:$0xf]
      %v245 = vsel %vm236, %v244, 0.0
      %246 = vadd.xlane.f32.xlu0 %v245
      %v247 = vpop.xlane.xlu0 %246
      %v248 = vmul.f32 %v243, %v247
      %v249 = vrsqrt.pop %v248
      %v250 = vmul.f32 %v248, %v249
      %vm251 = vcmp.eq.f32.partialorder %v248, inf
      %v252 = vsel %vm251, %v248, %v250
      %vm253 = vcmp.eq.f32.partialorder %v248, 0.0
      %v254 = vand.u32 %v248, 2147483648
      %v255 = vsel %vm253, %v254, %v252
      %v256 = vmax.f32 %v255, 1e-20
      %v257 = vrcp.pop %v256
      %v258 = vmul.f32 %v239, %v257
      %v259 = vadd.f32 %v258, 1.0
      %v260 = vmul.f32 %v259, 0.5
      %vm261 = vcmask 3072
      %262 = vst.msk [vmem:[%s3] sm:$0xf] %vm261, %v260
    $region33: #{lsp_loss_pallas.1} parent=1 // pred_fallthru
      _
    // Predicated region
    $region34: #{lsp_loss_pallas.1} parent=1 // pred_check
      _
    $region35: #{lsp_loss_pallas.1} parent=1 // pred_check_branch
      %264 = sbr.rel (0) target = $region37
    $region36: #{lsp_loss_pallas.1} parent=1 // pred_region
      _
    $region37: #{lsp_loss_pallas.1} parent=1 // pred_fallthru
      _
    // Predicated region
    $region38: #{lsp_loss_pallas.1} parent=1 // pred_check
      _
    $region39: #{lsp_loss_pallas.1} parent=1 // pred_check_branch
      %266 = sbr.rel (0) target = $region41
    $region40: #{lsp_loss_pallas.1} parent=1 // pred_region
      _
    $region41: #{lsp_loss_pallas.1} parent=1 // pred_fallthru
      _
    %267 = vsyncpa [#allocation6], 1
    %268 = vsyncpa [#allocation8], 1

</llo_original>
